<compile_context>
chip_gen: v7x
topology: tpu7x:2x2x1
jax: 0.10.0
libtpu: 0.0.40
codegen_flags: <defaults>
</compile_context>

<pallas_src>
import math

import jax
import jax.numpy as jnp
from jax import lax
from jax.experimental import pallas as pl
from jax.experimental.pallas import tpu as pltpu


_ONEHOT_MAX_VOCAB = 4096               # one-hot MXU gather only below this vocab
_MAX_TOKENS_PER_TILE = 1024
_GATHER_DEPTH = 8                      # in-flight row DMAs (HBM-gather path)
_OUT_TILE_BYTES_BIG = 4 * 1024 * 1024  # output-slab budget, 128 MiB VMEM parts
_OUT_TILE_BYTES_SMALL = 2 * 1024 * 1024  # output-slab budget, 64 MiB VMEM (v7x)
_DEFAULT_VMEM_CAP = 64 * 1024 * 1024   # conservative fallback (v7x-sized)


def _round_up(x: int, m: int) -> int:
    return ((x + m - 1) // m) * m


def _vmem_capacity_bytes() -> int:
    """Generation-aware VMEM capacity (128 MiB on v5e/v6e, 64 MiB on v7x)."""
    try:
        cap = int(getattr(pltpu.get_tpu_info(), "vmem_capacity_bytes", 0))
        if cap > 0:
            return cap
    except Exception:
        pass
    return _DEFAULT_VMEM_CAP


def _clamp_vmem_limit(needed_bytes: int, cap_bytes: int) -> int:
    """vmem_limit_bytes sized from the actual buffers, with headroom & a cap."""
    return int(min(max(needed_bytes, 16 * 1024 * 1024), int(cap_bytes * 0.9)))


# ---------------------------------------------------------------------------
# Path 1: small vocab, table resident in VMEM. Gather = one-hot MXU matmul.
# ---------------------------------------------------------------------------
def _make_onehot_kernel(scale: float, tokens_per_tile: int, vocab: int):
    def kernel(ids_ref, table_ref, out_ref):
        # ids_ref:   VMEM (T, 1) int32       this tile's token ids
        # table_ref: VMEM (vocab, d_model)   whole table; constant block index
        #                                    => DMA'd from HBM once, resident
        # out_ref:   VMEM (T, d_model)       dense output slab for this tile
        ids = ids_ref[...]                                          # (T, 1)
        iota = lax.broadcasted_iota(jnp.int32, (tokens_per_tile, vocab), 1)
        onehot = jnp.where(ids == iota, 1.0, 0.0).astype(table_ref.dtype)
        # One-hot entries are exactly {0, 1}; with HIGHEST precision the f32
        # matmul reproduces the gathered rows to within a couple of ULPs, so
        # the MXU performs the gather while the VPU stays free.
        rows = jnp.dot(onehot, table_ref[...],
                       preferred_element_type=jnp.float32,
                       precision=lax.Precision.HIGHEST)             # (T, d) f32
        # Scale in f32, then cast once on the dense store.
        out_ref[...] = (rows * scale).astype(out_ref.dtype)

    return kernel


def _embed_onehot(flat_ids, table, *, tokens_per_tile, scale, vmem_cap):
    n_pad = flat_ids.shape[0]
    vocab, d_model = table.shape
    itemsize = jnp.dtype(table.dtype).itemsize
    n_tiles = n_pad // tokens_per_tile
    ids_2d = flat_ids.reshape(n_pad, 1)   # (T, 1) tiles: T on sublanes (8-aligned)

    table_bytes = vocab * d_model * itemsize
    out_tile_bytes = tokens_per_tile * d_model * itemsize
    ids_tile_bytes = tokens_per_tile * 128 * 4          # lane-padded (T, 1) int32
    vmem_limit = _clamp_vmem_limit(
        2 * table_bytes + 2 * out_tile_bytes + 2 * ids_tile_bytes + (8 << 20),
        vmem_cap)

    return pl.pallas_call(
        _make_onehot_kernel(scale, tokens_per_tile, vocab),
        out_shape=jax.ShapeDtypeStruct((n_pad, d_model), table.dtype),
        grid=(n_tiles,),
        in_specs=[
            pl.BlockSpec((tokens_per_tile, 1), lambda i: (i, 0)),
            # Constant block index -> fetched from HBM only once.
            pl.BlockSpec((vocab, d_model), lambda i: (0, 0)),
        ],
        out_specs=pl.BlockSpec((tokens_per_tile, d_model), lambda i: (i, 0)),
        compiler_params=pltpu.CompilerParams(
            dimension_semantics=("parallel",),
            vmem_limit_bytes=vmem_limit,
        ),
    )(ids_2d, table)


# ---------------------------------------------------------------------------
# Path 2: large vocab, table stays in HBM. Gather = per-row async copies DMA'd
# straight into out_ref with an 8-deep pipeline (2*depth semaphore slots).
# ---------------------------------------------------------------------------
def _make_hbm_gather_kernel(scale: float, tokens_per_tile: int, depth: int):
    n_sem = 2 * depth   # slot(t) != slot(t+depth) -> start next before waiting

    def kernel(ids_ref, table_hbm, out_ref, sems):
        # ids_ref:   SMEM (T,) int32         this tile's token ids (blocked)
        # table_hbm: HBM  (vocab, d_model)   full table, manual DMA only
        # out_ref:   VMEM (T, d_model)       rows are DMA'd directly here
        # sems:      DMA semaphores (2*depth,)

        def start_row(t, row_id):
            pltpu.make_async_copy(
                table_hbm.at[pl.ds(row_id, 1), :],
                out_ref.at[pl.ds(t, 1), :],
                sems.at[t % n_sem],
            ).start()

        def wait_row(t):
            # Wait descriptor only needs a matching shape + the right
            # semaphore; the source row index is irrelevant for the wait.
            pltpu.make_async_copy(
                table_hbm.at[pl.ds(0, 1), :],
                out_ref.at[pl.ds(t, 1), :],
                sems.at[t % n_sem],
            ).wait()

        # Prime `depth` in-flight row gathers.
        for t in range(depth):
            start_row(t, ids_ref[t])

        def body(t, carry):
            # Hoist the SMEM id read above the DMA wait (clamped so the read
            # itself is always in-bounds; the start is still guarded).
            nxt = jnp.minimum(t + depth, tokens_per_tile - 1)
            next_id = ids_ref[nxt]

            @pl.when(t + depth < tokens_per_tile)
            def _():
                start_row(t + depth, next_id)

            wait_row(t)
            return carry

        lax.fori_loop(0, tokens_per_tile, body, 0)

        # One dense scaled pass over the gathered tile (scale in f32 before
        # casting back, so bf16 tables are scaled at full precision).
        out_ref[...] = (out_ref[...].astype(jnp.float32) * scale).astype(out_ref.dtype)

    return kernel


def _embed_hbm_gather(flat_ids, table, *, tokens_per_tile, scale, vmem_cap):
    n_pad = flat_ids.shape[0]
    vocab, d_model = table.shape
    itemsize = jnp.dtype(table.dtype).itemsize
    n_tiles = n_pad // tokens_per_tile
    depth = min(_GATHER_DEPTH, tokens_per_tile)

    out_tile_bytes = tokens_per_tile * d_model * itemsize
    vmem_limit = _clamp_vmem_limit(2 * out_tile_bytes + (8 << 20), vmem_cap)

    return pl.pallas_call(
        _make_hbm_gather_kernel(scale, tokens_per_tile, depth),
        out_shape=jax.ShapeDtypeStruct((n_pad, d_model), table.dtype),
        grid=(n_tiles,),
        in_specs=[
            # Per-tile blocked SMEM ids: no whole-vector scalar prefetch, no
            # SMEM blow-up for very large batch*seq.
            pl.BlockSpec((tokens_per_tile,), lambda i: (i,),
                         memory_space=pltpu.MemorySpace.SMEM),
            pl.BlockSpec(memory_space=pl.ANY),     # table stays in HBM
        ],
        out_specs=pl.BlockSpec((tokens_per_tile, d_model), lambda i: (i, 0)),
        scratch_shapes=[pltpu.SemaphoreType.DMA((2 * depth,))],
        compiler_params=pltpu.CompilerParams(
            dimension_semantics=("parallel",),
            vmem_limit_bytes=vmem_limit,
        ),
    )(flat_ids, table)


# ---------------------------------------------------------------------------
# Wrapper: tiling decisions + dispatch.
# ---------------------------------------------------------------------------
def embedding_forward(token_ids: jax.Array, table: jax.Array) -> jax.Array:
    """token_ids: integer array (any shape); table: [vocab, d_model].

    Returns table[token_ids] * sqrt(d_model), dtype of `table`.
    """
    lead_shape = tuple(token_ids.shape)
    vocab, d_model = table.shape
    n_tokens = 1
    for s in lead_shape:
        n_tokens *= int(s)
    if n_tokens == 0:
        return jnp.zeros((*lead_shape, d_model), table.dtype)

    scale = math.sqrt(float(d_model))
    itemsize = jnp.dtype(table.dtype).itemsize
    table_bytes = vocab * d_model * itemsize

    cap = _vmem_capacity_bytes()
    out_tile_bytes = (_OUT_TILE_BYTES_BIG if cap >= 96 * 1024 * 1024
                      else _OUT_TILE_BYTES_SMALL)
    # Dtype-aware sublane alignment: 8 rows f32, 16 bf16, 32 int8/fp8.
    sub = max(8, 32 // itemsize)

    budget_tokens = max(sub, out_tile_bytes // max(1, d_model * itemsize))
    tokens_per_tile = min(_MAX_TOKENS_PER_TILE, budget_tokens)
    # Keep >=2 tiles for moderately sized inputs so v7x's two TensorCores both
    # get work through the "parallel" grid axis.
    if n_tokens >= 256:
        tokens_per_tile = min(tokens_per_tile,
                              _round_up((n_tokens + 1) // 2, sub))
    tokens_per_tile = min(tokens_per_tile, _round_up(n_tokens, sub))
    tokens_per_tile = max(sub, _round_up(tokens_per_tile, sub))
    n_pad = _round_up(n_tokens, tokens_per_tile)

    flat_ids = token_ids.reshape(n_tokens).astype(jnp.int32)
    # Clamp out-of-range ids (UB in torch anyway) -> no unchecked OOB reads.
    flat_ids = jnp.clip(flat_ids, 0, vocab - 1)
    if n_pad != n_tokens:
        flat_ids = jnp.pad(flat_ids, (0, n_pad - n_tokens))  # pad rows use id 0

    use_onehot = (vocab <= _ONEHOT_MAX_VOCAB) and (table_bytes <= cap // 4)
    if use_onehot:
        out_flat = _embed_onehot(
            flat_ids, table, tokens_per_tile=tokens_per_tile,
            scale=scale, vmem_cap=cap)
    else:
        # TODO(synk): mid-size VMEM-resident tables (vocab > 4K but fitting
        # VMEM) could use a vectorized in-VMEM dynamic gather once that
        # lowering path is verified; they currently use the HBM row-DMA path.
        out_flat = _embed_hbm_gather(
            flat_ids, table, tokens_per_tile=tokens_per_tile,
            scale=scale, vmem_cap=cap)

    if n_pad != n_tokens:
        out_flat = out_flat[:n_tokens]
    return out_flat.reshape(*lead_shape, d_model)


if __name__ == "__main__":
    # Small shapes consistent with the module: vocab=64, d_model=32, batch=2, seq=8.
    vocab, d_model = 64, 32
    batch, seq = 2, 8

    key = jax.random.PRNGKey(0)
    k_table, k_ids = jax.random.split(key)

    # nn.Embedding default init: N(0, 1).
    table = jax.random.normal(k_table, (vocab, d_model), dtype=jnp.float32)
    token_ids = jax.random.randint(k_ids, (batch, seq), 0, vocab, dtype=jnp.int32)

    out = embedding_forward(token_ids, table)
    out = jax.block_until_ready(out)

    # Reference in plain JAX: gather + scale.
    ref = table[token_ids] * math.sqrt(float(d_model))
    assert out.shape == (batch, seq, d_model), out.shape
    max_err = float(jnp.max(jnp.abs(out - ref)))
    assert jnp.allclose(out, ref, atol=1e-4, rtol=1e-4), max_err

    print("KERNEL_OK")
</pallas_src>

<mosaic_0001>
module attributes {stable_mosaic.version = 11 : i64} {
  func.func @kernel(%arg0: i32, %arg1: memref<16x1xi32, #tpu.memory_space<vmem>>, %arg2: memref<64x32xf32, #tpu.memory_space<vmem>>, %arg3: memref<16x32xf32, #tpu.memory_space<vmem>>) attributes {dimension_semantics = [#tpu.dimension_semantics<parallel>], iteration_bounds = array<i64: 1>, scalar_prefetch = 0 : i64, scratch_operands = 0 : i64, tpu.core_type = #tpu.core_type<tc>, window_params = [{transform_indices = @transform_0, window_bounds = array<i64: 16, 1>}, {pipeline_mode = #tpu.pipeline_mode<synchronous>, transform_indices = @transform_1, window_bounds = array<i64: 64, 32>}, {transform_indices = @transform_2, window_bounds = array<i64: 16, 32>}]} {
    %c0 = arith.constant 0 : index
    %c0_0 = arith.constant 0 : index
    %0 = vector.load %arg1[%c0, %c0_0] : memref<16x1xi32, #tpu.memory_space<vmem>>, vector<16x1xi32>
    %1 = tpu.iota {dimensions = array<i32: 1>} : vector<16x64xi32>
    %2 = vector.broadcast %0 : vector<16x1xi32> to vector<16x64xi32>
    %3 = arith.cmpi eq, %2, %1 : vector<16x64xi32>
    %cst = arith.constant 1.000000e+00 : f32
    %cst_1 = arith.constant 0.000000e+00 : f32
    %4 = vector.broadcast %cst : f32 to vector<16x64xf32>
    %5 = vector.broadcast %cst_1 : f32 to vector<16x64xf32>
    %6 = arith.select %3, %4, %5 : vector<16x64xi1>, vector<16x64xf32>
    %c0_2 = arith.constant 0 : index
    %c0_3 = arith.constant 0 : index
    %7 = vector.load %arg2[%c0_2, %c0_3] : memref<64x32xf32, #tpu.memory_space<vmem>>, vector<64x32xf32>
    %cst_4 = arith.constant dense<0.000000e+00> : vector<16x32xf32>
    %8 = tpu.matmul %6, %7, %cst_4 {dimension_numbers = #tpu.dot_dimension_numbers<[1], [0], [0], [1], [0, 0, 1, 1], [], []>, precision = #tpu.contract_precision<fp32>} : vector<16x64xf32>, vector<64x32xf32>, vector<16x32xf32> -> vector<16x32xf32>
    %cst_5 = arith.constant 5.65685415 : f32
    %9 = vector.broadcast %cst_5 : f32 to vector<16x32xf32>
    %10 = arith.mulf %8, %9 : vector<16x32xf32>
    %c0_6 = arith.constant 0 : index
    %c0_7 = arith.constant 0 : index
    %11 = vector.load %arg3[%c0_6, %c0_7] : memref<16x32xf32, #tpu.memory_space<vmem>>, vector<16x32xf32>
    tpu.vector_store %arg3[%c0_6, %c0_7], %10 {strides = array<i32>} : memref<16x32xf32, #tpu.memory_space<vmem>>, vector<16x32xf32>,
    return
  }
  func.func @transform_0(%arg0: i32) -> (i32, i32) {
    %c0_i32 = arith.constant 0 : i32
    %c0_i32_0 = arith.constant 0 : i32
    return %arg0, %c0_i32 : i32, i32
  }
  func.func @transform_1(%arg0: i32) -> (i32, i32) {
    %c0_i32 = arith.constant 0 : i32
    %c0_i32_0 = arith.constant 0 : i32
    %c0_i32_1 = arith.constant 0 : i32
    return %c0_i32, %c0_i32_0 : i32, i32
  }
  func.func @transform_2(%arg0: i32) -> (i32, i32) {
    %c0_i32 = arith.constant 0 : i32
    %c0_i32_0 = arith.constant 0 : i32
    return %arg0, %c0_i32 : i32, i32
  }
}

</mosaic_0001>

<llo_original>
// kernel: tpu_custom_call.1
$region0: #{tpu_custom_call.1}
  #allocation0 [shape = 'u32[]', space=smem, size = 0x4, offset = 0x4, fixed_abs, tag = 'smem constant byte address 0x4 - core index']
  #allocation1 [shape = 'u32[144,128]{1,0:T(1,128)}', space=vmem, size = 0x12000, scoped, tag = 'internal scratch']
  %s0 = inlined_call_operand.vmem [shape: s32[16,1], index: 0, kind: input, shape index: {}]
  %s1 = inlined_call_operand.vmem [shape: f32[64,32], index: 1, kind: input, shape index: {}]
  %s2 = inlined_call_operand.hbm [shape: f32[16,32], index: 2, kind: output, shape index: {}]
  %s3 = sld [smem:[#allocation0]]
  $region18: #{tpu_custom_call.1} parent=0
    _
  %s5 = ssub.s32 1, %s3
  %s6 = scalar_select 0, %s5, %s3
  $region1: #{tpu_custom_call.1} parent=0
    #allocation2 [shape = 'u8[8192]{0}', space=vmem, size = 0x2000, scoped, tag = 'output window, operand 0, single buffered']
    #allocation3 [shape = 's32[1]{0}', space=sflag, size = 0x4, scoped, tag = 'scoped memory for tpu_custom_call.1']
    %7 = vsyncpa [#allocation3], 0
    // Predicated region
    $region2: #{tpu_custom_call.1} parent=1 // pred_check
      _
    $region3: #{tpu_custom_call.1} parent=1 // pred_check_branch
      %9 = sbr.rel (0) target = $region5
    $region4: #{tpu_custom_call.1} parent=1 // pred_region
      _
    $region5: #{tpu_custom_call.1} parent=1 // pred_fallthru
      _
    // Predicated region
    $region6: #{tpu_custom_call.1} parent=1 // pred_check
      _
    $region7: #{tpu_custom_call.1} parent=1 // pred_check_branch
      %11 = sbr.rel (0) target = $region9
    $region8: #{tpu_custom_call.1} parent=1 // pred_region
      _
    $region9: #{tpu_custom_call.1} parent=1 // pred_fallthru
      _
    %v12 = vld [vmem:[%s0] sm:$0xff]
    %v13 = vld [vmem:[%s0 + $0x8] sm:$0xff]
    %v14 = vlaneseq
    %v15 = vand.u32 %v14, 127
    %16 = vset.pattern.permute.xlu0 0
    %17 = vperm.xlu0 %16, %v12
    %v18 = vpop.permute.xlu0 %17
    %19 = vset.pattern.permute.xlu0 0
    %20 = vperm.xlu0 %19, %v13
    %v21 = vpop.permute.xlu0 %20
    %vm22 = vcmp.eq.s32.totalorder %v18, %v15
    %vm23 = vcmp.eq.s32.totalorder %v21, %v15
    %v24 = vsel %vm22, 1.0, 0.0
    %v25 = vsel %vm23, 1.0, 0.0
    %v26 = vld [vmem:[%s1] sm:$0xff]
    %v27 = vld [vmem:[%s1 + $0x8] sm:$0xff]
    %v28 = vld [vmem:[%s1 + $0x10] sm:$0xff]
    %v29 = vld [vmem:[%s1 + $0x18] sm:$0xff]
    %v30 = vld [vmem:[%s1 + $0x20] sm:$0xff]
    %v31 = vld [vmem:[%s1 + $0x28] sm:$0xff]
    %v32 = vld [vmem:[%s1 + $0x30] sm:$0xff]
    %v33 = vld [vmem:[%s1 + $0x38] sm:$0xff]
    %vm34 = vcmask 523264
    %v36 = vsel %vm34, %v24, 0
    %v39 = vsel %vm34, %v25, 0
    %41 = vmatprep.subr.mxu0 0.0
    %v42 = vand.u32 %v26, 4294901760
    %43 = vmatpush1.msra.mxu0 %v42
    %44 = vmatprep.subr.mxu0 0.0
    %v45 = vand.u32 %v27, 4294901760
    %46 = vmatpush1.msra.mxu0 %v45
    %47 = vmatprep.subr.mxu0 0.0
    %v48 = vand.u32 %v28, 4294901760
    %49 = vmatpush1.msra.mxu0 %v48
    %50 = vmatprep.subr.mxu0 0.0
    %v51 = vand.u32 %v29, 4294901760
    %52 = vmatpush1.msra.mxu0 %v51
    %53 = vmatprep.subr.mxu0 0.0
    %v54 = vand.u32 %v30, 4294901760
    %55 = vmatpush1.msra.mxu0 %v54
    %56 = vmatprep.subr.mxu0 0.0
    %v57 = vand.u32 %v31, 4294901760
    %58 = vmatpush1.msra.mxu0 %v57
    %59 = vmatprep.subr.mxu0 0.0
    %v60 = vand.u32 %v32, 4294901760
    %61 = vmatpush1.msra.mxu0 %v60
    %62 = vmatprep.subr.mxu0 0.0
    %v63 = vand.u32 %v33, 4294901760
    %64 = vmatpush1.msra.mxu0 %v63
    %65 = vmatprep.subr.mxu0 0.0
    %66 = vmatpush1.msra.mxu0 0.0
    %67 = vmatprep.subr.mxu0 0.0
    %68 = vmatpush1.msra.mxu0 0.0
    %69 = vmatprep.subr.mxu0 0.0
    %70 = vmatpush1.msra.mxu0 0.0
    %71 = vmatprep.subr.mxu0 0.0
    %72 = vmatpush1.msra.mxu0 0.0
    %73 = vmatprep.subr.mxu0 0.0
    %74 = vmatpush1.msra.mxu0 0.0
    %75 = vmatprep.subr.mxu0 0.0
    %76 = vmatpush1.msra.mxu0 0.0
    %77 = vmatprep.subr.mxu0 0.0
    %78 = vmatpush1.msra.mxu0 0.0
    %79 = vmatprep.subr.mxu0 0.0
    %80 = vmatpush1.msra.mxu0 0.0
    %81 = vmatprep.subr.mxu0 0.0
    %82 = vmatpush1.msra.mxu0 0.0
    %83 = vmatprep.subr.mxu0 0.0
    %84 = vmatpush1.msra.mxu0 0.0
    %85 = vmatprep.subr.mxu0 0.0
    %86 = vmatpush1.msra.mxu0 0.0
    %87 = vmatprep.subr.mxu0 0.0
    %88 = vmatpush1.msra.mxu0 0.0
    %89 = vmatprep.subr.mxu0 0.0
    %90 = vmatpush1.msra.mxu0 0.0
    %91 = vmatprep.subr.mxu0 0.0
    %92 = vmatpush1.msra.mxu0 0.0
    %93 = vmatprep.subr.mxu0 0.0
    %94 = vmatpush1.msra.mxu0 0.0
    %95 = vmatprep.subr.mxu0 0.0
    %96 = vmatpush1.msra.mxu0 0.0
    %97 = vmatprep.subr.mxu0 0.0
    %98 = vmatpush1.msra.mxu0 0.0
    %99 = vmatprep.subr.mxu0 0.0
    %100 = vmatpush1.msra.mxu0 0.0
    %101 = vmatprep.subr.mxu0 0.0
    %102 = vmatpush1.msra.mxu0 0.0
    %103 = vmatprep.subr.mxu0 0.0
    %104 = vmatpush1.msra.mxu0 0.0
    %105 = vmatprep.subr.mxu0 0.0
    %106 = vmatpush1.msra.mxu0 0.0
    %107 = vmatprep.subr.mxu0 0.0
    %108 = vmatpush1.msra.mxu0 0.0
    %109 = vmatprep.subr.mxu0 0.0
    %110 = vmatpush1.msra.mxu0 0.0
    %111 = vmatprep.subr.mxu0 0.0
    %112 = vmatpush1.msra.mxu0 0.0
    %113 = vmatprep.mubr.f32.mxu0 0.0
    %v114 = vand.u32 %v36, 4294901760
    %v115 = vsub.f32 %v36, %v114
    %v116 = vand.u32 %v115, 4294901760
    %v117 = vsub.f32 %v115, %v116
    %v118 = vand.u32 %v117, 4294901760
    %119 = vmatmul.mubr.f32.gmra.mrb[0].mxu0 %v118
    %v120 = vpop.f32.mrb[0].mxu0
    %v121 = vadd.f32 0.0, %v120
    %v122 = vpop.f32.mrb[0].mxu0
    %123 = vmatprep.mubr.f32.mxu0 0.0
    %v124 = vand.u32 %v39, 4294901760
    %v125 = vsub.f32 %v39, %v124
    %v126 = vand.u32 %v125, 4294901760
    %v127 = vsub.f32 %v125, %v126
    %v128 = vand.u32 %v127, 4294901760
    %129 = vmatmul.mubr.f32.gmra.mrb[0].mxu0 %v128
    %v130 = vpop.f32.mrb[0].mxu0
    %v131 = vadd.f32 0.0, %v130
    %v132 = vpop.f32.mrb[0].mxu0
    %133 = vdwg.mxu0
    %134 = vmatprep.subr.mxu0 0.0
    %v135 = vand.u32 %v26, 4294901760
    %v136 = vsub.f32 %v26, %v135
    %v137 = vand.u32 %v136, 4294901760
    %v138 = vsub.f32 %v136, %v137
    %v139 = vand.u32 %v138, 4294901760
    %140 = vmatpush1.msra.mxu0 %v139
    %141 = vmatprep.subr.mxu0 0.0
    %v142 = vand.u32 %v27, 4294901760
    %v143 = vsub.f32 %v27, %v142
    %v144 = vand.u32 %v143, 4294901760
    %v145 = vsub.f32 %v143, %v144
    %v146 = vand.u32 %v145, 4294901760
    %147 = vmatpush1.msra.mxu0 %v146
    %148 = vmatprep.subr.mxu0 0.0
    %v149 = vand.u32 %v28, 4294901760
    %v150 = vsub.f32 %v28, %v149
    %v151 = vand.u32 %v150, 4294901760
    %v152 = vsub.f32 %v150, %v151
    %v153 = vand.u32 %v152, 4294901760
    %154 = vmatpush1.msra.mxu0 %v153
    %155 = vmatprep.subr.mxu0 0.0
    %v156 = vand.u32 %v29, 4294901760
    %v157 = vsub.f32 %v29, %v156
    %v158 = vand.u32 %v157, 4294901760
    %v159 = vsub.f32 %v157, %v158
    %v160 = vand.u32 %v159, 4294901760
    %161 = vmatpush1.msra.mxu0 %v160
    %162 = vmatprep.subr.mxu0 0.0
    %v163 = vand.u32 %v30, 4294901760
    %v164 = vsub.f32 %v30, %v163
    %v165 = vand.u32 %v164, 4294901760
    %v166 = vsub.f32 %v164, %v165
    %v167 = vand.u32 %v166, 4294901760
    %168 = vmatpush1.msra.mxu0 %v167
    %169 = vmatprep.subr.mxu0 0.0
    %v170 = vand.u32 %v31, 4294901760
    %v171 = vsub.f32 %v31, %v170
    %v172 = vand.u32 %v171, 4294901760
    %v173 = vsub.f32 %v171, %v172
    %v174 = vand.u32 %v173, 4294901760
    %175 = vmatpush1.msra.mxu0 %v174
    %176 = vmatprep.subr.mxu0 0.0
    %v177 = vand.u32 %v32, 4294901760
    %v178 = vsub.f32 %v32, %v177
    %v179 = vand.u32 %v178, 4294901760
    %v180 = vsub.f32 %v178, %v179
    %v181 = vand.u32 %v180, 4294901760
    %182 = vmatpush1.msra.mxu0 %v181
    %183 = vmatprep.subr.mxu0 0.0
    %v184 = vand.u32 %v33, 4294901760
    %v185 = vsub.f32 %v33, %v184
    %v186 = vand.u32 %v185, 4294901760
    %v187 = vsub.f32 %v185, %v186
    %v188 = vand.u32 %v187, 4294901760
    %189 = vmatpush1.msra.mxu0 %v188
    %190 = vmatprep.subr.mxu0 0.0
    %191 = vmatpush1.msra.mxu0 0.0
    %192 = vmatprep.subr.mxu0 0.0
    %193 = vmatpush1.msra.mxu0 0.0
    %194 = vmatprep.subr.mxu0 0.0
    %195 = vmatpush1.msra.mxu0 0.0
    %196 = vmatprep.subr.mxu0 0.0
    %197 = vmatpush1.msra.mxu0 0.0
    %198 = vmatprep.subr.mxu0 0.0
    %199 = vmatpush1.msra.mxu0 0.0
    %200 = vmatprep.subr.mxu0 0.0
    %201 = vmatpush1.msra.mxu0 0.0
    %202 = vmatprep.subr.mxu0 0.0
    %203 = vmatpush1.msra.mxu0 0.0
    %204 = vmatprep.subr.mxu0 0.0
    %205 = vmatpush1.msra.mxu0 0.0
    %206 = vmatprep.subr.mxu0 0.0
    %207 = vmatpush1.msra.mxu0 0.0
    %208 = vmatprep.subr.mxu0 0.0
    %209 = vmatpush1.msra.mxu0 0.0
    %210 = vmatprep.subr.mxu0 0.0
    %211 = vmatpush1.msra.mxu0 0.0
    %212 = vmatprep.subr.mxu0 0.0
    %213 = vmatpush1.msra.mxu0 0.0
    %214 = vmatprep.subr.mxu0 0.0
    %215 = vmatpush1.msra.mxu0 0.0
    %216 = vmatprep.subr.mxu0 0.0
    %217 = vmatpush1.msra.mxu0 0.0
    %218 = vmatprep.subr.mxu0 0.0
    %219 = vmatpush1.msra.mxu0 0.0
    %220 = vmatprep.subr.mxu0 0.0
    %221 = vmatpush1.msra.mxu0 0.0
    %222 = vmatprep.subr.mxu0 0.0
    %223 = vmatpush1.msra.mxu0 0.0
    %224 = vmatprep.subr.mxu0 0.0
    %225 = vmatpush1.msra.mxu0 0.0
    %226 = vmatprep.subr.mxu0 0.0
    %227 = vmatpush1.msra.mxu0 0.0
    %228 = vmatprep.subr.mxu0 0.0
    %229 = vmatpush1.msra.mxu0 0.0
    %230 = vmatprep.subr.mxu0 0.0
    %231 = vmatpush1.msra.mxu0 0.0
    %232 = vmatprep.subr.mxu0 0.0
    %233 = vmatpush1.msra.mxu0 0.0
    %234 = vmatprep.subr.mxu0 0.0
    %235 = vmatpush1.msra.mxu0 0.0
    %236 = vmatprep.subr.mxu0 0.0
    %237 = vmatpush1.msra.mxu0 0.0
    %238 = vmatprep.mubr.f32.mxu0 0.0
    %v239 = vand.u32 %v36, 4294901760
    %240 = vmatmul.mubr.f32.gmra.mrb[0].mxu0 %v239
    %v241 = vpop.f32.mrb[0].mxu0
    %v242 = vadd.f32 %v121, %v241
    %v243 = vpop.f32.mrb[0].mxu0
    %244 = vmatprep.mubr.f32.mxu0 0.0
    %v245 = vand.u32 %v39, 4294901760
    %246 = vmatmul.mubr.f32.gmra.mrb[0].mxu0 %v245
    %v247 = vpop.f32.mrb[0].mxu0
    %v248 = vadd.f32 %v131, %v247
    %v249 = vpop.f32.mrb[0].mxu0
    %250 = vdwg.mxu0
    %251 = vmatprep.subr.mxu0 0.0
    %v252 = vand.u32 %v26, 4294901760
    %v253 = vsub.f32 %v26, %v252
    %254 = vmatpush1.msra.mxu0 %v253
    %255 = vmatprep.subr.mxu0 0.0
    %v256 = vand.u32 %v27, 4294901760
    %v257 = vsub.f32 %v27, %v256
    %258 = vmatpush1.msra.mxu0 %v257
    %259 = vmatprep.subr.mxu0 0.0
    %v260 = vand.u32 %v28, 4294901760
    %v261 = vsub.f32 %v28, %v260
    %262 = vmatpush1.msra.mxu0 %v261
    %263 = vmatprep.subr.mxu0 0.0
    %v264 = vand.u32 %v29, 4294901760
    %v265 = vsub.f32 %v29, %v264
    %266 = vmatpush1.msra.mxu0 %v265
    %267 = vmatprep.subr.mxu0 0.0
    %v268 = vand.u32 %v30, 4294901760
    %v269 = vsub.f32 %v30, %v268
    %270 = vmatpush1.msra.mxu0 %v269
    %271 = vmatprep.subr.mxu0 0.0
    %v272 = vand.u32 %v31, 4294901760
    %v273 = vsub.f32 %v31, %v272
    %274 = vmatpush1.msra.mxu0 %v273
    %275 = vmatprep.subr.mxu0 0.0
    %v276 = vand.u32 %v32, 4294901760
    %v277 = vsub.f32 %v32, %v276
    %278 = vmatpush1.msra.mxu0 %v277
    %279 = vmatprep.subr.mxu0 0.0
    %v280 = vand.u32 %v33, 4294901760
    %v281 = vsub.f32 %v33, %v280
    %282 = vmatpush1.msra.mxu0 %v281
    %283 = vmatprep.subr.mxu0 0.0
    %284 = vmatpush1.msra.mxu0 0.0
    %285 = vmatprep.subr.mxu0 0.0
    %286 = vmatpush1.msra.mxu0 0.0
    %287 = vmatprep.subr.mxu0 0.0
    %288 = vmatpush1.msra.mxu0 0.0
    %289 = vmatprep.subr.mxu0 0.0
    %290 = vmatpush1.msra.mxu0 0.0
    %291 = vmatprep.subr.mxu0 0.0
    %292 = vmatpush1.msra.mxu0 0.0
    %293 = vmatprep.subr.mxu0 0.0
    %294 = vmatpush1.msra.mxu0 0.0
    %295 = vmatprep.subr.mxu0 0.0
    %296 = vmatpush1.msra.mxu0 0.0
    %297 = vmatprep.subr.mxu0 0.0
    %298 = vmatpush1.msra.mxu0 0.0
    %299 = vmatprep.subr.mxu0 0.0
    %300 = vmatpush1.msra.mxu0 0.0
    %301 = vmatprep.subr.mxu0 0.0
    %302 = vmatpush1.msra.mxu0 0.0
    %303 = vmatprep.subr.mxu0 0.0
    %304 = vmatpush1.msra.mxu0 0.0
    %305 = vmatprep.subr.mxu0 0.0
    %306 = vmatpush1.msra.mxu0 0.0
    %307 = vmatprep.subr.mxu0 0.0
    %308 = vmatpush1.msra.mxu0 0.0
    %309 = vmatprep.subr.mxu0 0.0
    %310 = vmatpush1.msra.mxu0 0.0
    %311 = vmatprep.subr.mxu0 0.0
    %312 = vmatpush1.msra.mxu0 0.0
    %313 = vmatprep.subr.mxu0 0.0
    %314 = vmatpush1.msra.mxu0 0.0
    %315 = vmatprep.subr.mxu0 0.0
    %316 = vmatpush1.msra.mxu0 0.0
    %317 = vmatprep.subr.mxu0 0.0
    %318 = vmatpush1.msra.mxu0 0.0
    %319 = vmatprep.subr.mxu0 0.0
    %320 = vmatpush1.msra.mxu0 0.0
    %321 = vmatprep.subr.mxu0 0.0
    %322 = vmatpush1.msra.mxu0 0.0
    %323 = vmatprep.subr.mxu0 0.0
    %324 = vmatpush1.msra.mxu0 0.0
    %325 = vmatprep.subr.mxu0 0.0
    %326 = vmatpush1.msra.mxu0 0.0
    %327 = vmatprep.subr.mxu0 0.0
    %328 = vmatpush1.msra.mxu0 0.0
    %329 = vmatprep.subr.mxu0 0.0
    %330 = vmatpush1.msra.mxu0 0.0
    %331 = vmatprep.mubr.f32.mxu0 0.0
    %v332 = vand.u32 %v36, 4294901760
    %v333 = vsub.f32 %v36, %v332
    %334 = vmatmul.mubr.f32.gmra.mrb[0].mxu0 %v333
    %v335 = vpop.f32.mrb[0].mxu0
    %v336 = vadd.f32 %v242, %v335
    %v337 = vpop.f32.mrb[0].mxu0
    %338 = vmatprep.mubr.f32.mxu0 0.0
    %v339 = vand.u32 %v39, 4294901760
    %v340 = vsub.f32 %v39, %v339
    %341 = vmatmul.mubr.f32.gmra.mrb[0].mxu0 %v340
    %v342 = vpop.f32.mrb[0].mxu0
    %v343 = vadd.f32 %v248, %v342
    %v344 = vpop.f32.mrb[0].mxu0
    %345 = vdwg.mxu0
    %346 = vmatprep.subr.mxu0 0.0
    %v347 = vand.u32 %v26, 4294901760
    %348 = vmatpush1.msra.mxu0 %v347
    %349 = vmatprep.subr.mxu0 0.0
    %v350 = vand.u32 %v27, 4294901760
    %351 = vmatpush1.msra.mxu0 %v350
    %352 = vmatprep.subr.mxu0 0.0
    %v353 = vand.u32 %v28, 4294901760
    %354 = vmatpush1.msra.mxu0 %v353
    %355 = vmatprep.subr.mxu0 0.0
    %v356 = vand.u32 %v29, 4294901760
    %357 = vmatpush1.msra.mxu0 %v356
    %358 = vmatprep.subr.mxu0 0.0
    %v359 = vand.u32 %v30, 4294901760
    %360 = vmatpush1.msra.mxu0 %v359
    %361 = vmatprep.subr.mxu0 0.0
    %v362 = vand.u32 %v31, 4294901760
    %363 = vmatpush1.msra.mxu0 %v362
    %364 = vmatprep.subr.mxu0 0.0
    %v365 = vand.u32 %v32, 4294901760
    %366 = vmatpush1.msra.mxu0 %v365
    %367 = vmatprep.subr.mxu0 0.0
    %v368 = vand.u32 %v33, 4294901760
    %369 = vmatpush1.msra.mxu0 %v368
    %370 = vmatprep.subr.mxu0 0.0
    %371 = vmatpush1.msra.mxu0 0.0
    %372 = vmatprep.subr.mxu0 0.0
    %373 = vmatpush1.msra.mxu0 0.0
    %374 = vmatprep.subr.mxu0 0.0
    %375 = vmatpush1.msra.mxu0 0.0
    %376 = vmatprep.subr.mxu0 0.0
    %377 = vmatpush1.msra.mxu0 0.0
    %378 = vmatprep.subr.mxu0 0.0
    %379 = vmatpush1.msra.mxu0 0.0
    %380 = vmatprep.subr.mxu0 0.0
    %381 = vmatpush1.msra.mxu0 0.0
    %382 = vmatprep.subr.mxu0 0.0
    %383 = vmatpush1.msra.mxu0 0.0
    %384 = vmatprep.subr.mxu0 0.0
    %385 = vmatpush1.msra.mxu0 0.0
    %386 = vmatprep.subr.mxu0 0.0
    %387 = vmatpush1.msra.mxu0 0.0
    %388 = vmatprep.subr.mxu0 0.0
    %389 = vmatpush1.msra.mxu0 0.0
    %390 = vmatprep.subr.mxu0 0.0
    %391 = vmatpush1.msra.mxu0 0.0
    %392 = vmatprep.subr.mxu0 0.0
    %393 = vmatpush1.msra.mxu0 0.0
    %394 = vmatprep.subr.mxu0 0.0
    %395 = vmatpush1.msra.mxu0 0.0
    %396 = vmatprep.subr.mxu0 0.0
    %397 = vmatpush1.msra.mxu0 0.0
    %398 = vmatprep.subr.mxu0 0.0
    %399 = vmatpush1.msra.mxu0 0.0
    %400 = vmatprep.subr.mxu0 0.0
    %401 = vmatpush1.msra.mxu0 0.0
    %402 = vmatprep.subr.mxu0 0.0
    %403 = vmatpush1.msra.mxu0 0.0
    %404 = vmatprep.subr.mxu0 0.0
    %405 = vmatpush1.msra.mxu0 0.0
    %406 = vmatprep.subr.mxu0 0.0
    %407 = vmatpush1.msra.mxu0 0.0
    %408 = vmatprep.subr.mxu0 0.0
    %409 = vmatpush1.msra.mxu0 0.0
    %410 = vmatprep.subr.mxu0 0.0
    %411 = vmatpush1.msra.mxu0 0.0
    %412 = vmatprep.subr.mxu0 0.0
    %413 = vmatpush1.msra.mxu0 0.0
    %414 = vmatprep.subr.mxu0 0.0
    %415 = vmatpush1.msra.mxu0 0.0
    %416 = vmatprep.subr.mxu0 0.0
    %417 = vmatpush1.msra.mxu0 0.0
    %418 = vmatprep.mubr.f32.mxu0 0.0
    %v419 = vand.u32 %v36, 4294901760
    %v420 = vsub.f32 %v36, %v419
    %v421 = vand.u32 %v420, 4294901760
    %422 = vmatmul.mubr.f32.gmra.mrb[0].mxu0 %v421
    %v423 = vpop.f32.mrb[0].mxu0
    %v424 = vadd.f32 %v336, %v423
    %v425 = vpop.f32.mrb[0].mxu0
    %426 = vmatprep.mubr.f32.mxu0 0.0
    %v427 = vand.u32 %v39, 4294901760
    %v428 = vsub.f32 %v39, %v427
    %v429 = vand.u32 %v428, 4294901760
    %430 = vmatmul.mubr.f32.gmra.mrb[0].mxu0 %v429
    %v431 = vpop.f32.mrb[0].mxu0
    %v432 = vadd.f32 %v343, %v431
    %v433 = vpop.f32.mrb[0].mxu0
    %434 = vdwg.mxu0
    %435 = vmatprep.subr.mxu0 0.0
    %v436 = vand.u32 %v26, 4294901760
    %v437 = vsub.f32 %v26, %v436
    %v438 = vand.u32 %v437, 4294901760
    %439 = vmatpush1.msra.mxu0 %v438
    %440 = vmatprep.subr.mxu0 0.0
    %v441 = vand.u32 %v27, 4294901760
    %v442 = vsub.f32 %v27, %v441
    %v443 = vand.u32 %v442, 4294901760
    %444 = vmatpush1.msra.mxu0 %v443
    %445 = vmatprep.subr.mxu0 0.0
    %v446 = vand.u32 %v28, 4294901760
    %v447 = vsub.f32 %v28, %v446
    %v448 = vand.u32 %v447, 4294901760
    %449 = vmatpush1.msra.mxu0 %v448
    %450 = vmatprep.subr.mxu0 0.0
    %v451 = vand.u32 %v29, 4294901760
    %v452 = vsub.f32 %v29, %v451
    %v453 = vand.u32 %v452, 4294901760
    %454 = vmatpush1.msra.mxu0 %v453
    %455 = vmatprep.subr.mxu0 0.0
    %v456 = vand.u32 %v30, 4294901760
    %v457 = vsub.f32 %v30, %v456
    %v458 = vand.u32 %v457, 4294901760
    %459 = vmatpush1.msra.mxu0 %v458
    %460 = vmatprep.subr.mxu0 0.0
    %v461 = vand.u32 %v31, 4294901760
    %v462 = vsub.f32 %v31, %v461
    %v463 = vand.u32 %v462, 4294901760
    %464 = vmatpush1.msra.mxu0 %v463
    %465 = vmatprep.subr.mxu0 0.0
    %v466 = vand.u32 %v32, 4294901760
    %v467 = vsub.f32 %v32, %v466
    %v468 = vand.u32 %v467, 4294901760
    %469 = vmatpush1.msra.mxu0 %v468
    %470 = vmatprep.subr.mxu0 0.0
    %v471 = vand.u32 %v33, 4294901760
    %v472 = vsub.f32 %v33, %v471
    %v473 = vand.u32 %v472, 4294901760
    %474 = vmatpush1.msra.mxu0 %v473
    %475 = vmatprep.subr.mxu0 0.0
    %476 = vmatpush1.msra.mxu0 0.0
    %477 = vmatprep.subr.mxu0 0.0
    %478 = vmatpush1.msra.mxu0 0.0
    %479 = vmatprep.subr.mxu0 0.0
    %480 = vmatpush1.msra.mxu0 0.0
    %481 = vmatprep.subr.mxu0 0.0
    %482 = vmatpush1.msra.mxu0 0.0
    %483 = vmatprep.subr.mxu0 0.0
    %484 = vmatpush1.msra.mxu0 0.0
    %485 = vmatprep.subr.mxu0 0.0
    %486 = vmatpush1.msra.mxu0 0.0
    %487 = vmatprep.subr.mxu0 0.0
    %488 = vmatpush1.msra.mxu0 0.0
    %489 = vmatprep.subr.mxu0 0.0
    %490 = vmatpush1.msra.mxu0 0.0
    %491 = vmatprep.subr.mxu0 0.0
    %492 = vmatpush1.msra.mxu0 0.0
    %493 = vmatprep.subr.mxu0 0.0
    %494 = vmatpush1.msra.mxu0 0.0
    %495 = vmatprep.subr.mxu0 0.0
    %496 = vmatpush1.msra.mxu0 0.0
    %497 = vmatprep.subr.mxu0 0.0
    %498 = vmatpush1.msra.mxu0 0.0
    %499 = vmatprep.subr.mxu0 0.0
    %500 = vmatpush1.msra.mxu0 0.0
    %501 = vmatprep.subr.mxu0 0.0
    %502 = vmatpush1.msra.mxu0 0.0
    %503 = vmatprep.subr.mxu0 0.0
    %504 = vmatpush1.msra.mxu0 0.0
    %505 = vmatprep.subr.mxu0 0.0
    %506 = vmatpush1.msra.mxu0 0.0
    %507 = vmatprep.subr.mxu0 0.0
    %508 = vmatpush1.msra.mxu0 0.0
    %509 = vmatprep.subr.mxu0 0.0
    %510 = vmatpush1.msra.mxu0 0.0
    %511 = vmatprep.subr.mxu0 0.0
    %512 = vmatpush1.msra.mxu0 0.0
    %513 = vmatprep.subr.mxu0 0.0
    %514 = vmatpush1.msra.mxu0 0.0
    %515 = vmatprep.subr.mxu0 0.0
    %516 = vmatpush1.msra.mxu0 0.0
    %517 = vmatprep.subr.mxu0 0.0
    %518 = vmatpush1.msra.mxu0 0.0
    %519 = vmatprep.subr.mxu0 0.0
    %520 = vmatpush1.msra.mxu0 0.0
    %521 = vmatprep.subr.mxu0 0.0
    %522 = vmatpush1.msra.mxu0 0.0
    %523 = vmatprep.mubr.f32.mxu0 0.0
    %v524 = vand.u32 %v36, 4294901760
    %525 = vmatmul.mubr.f32.gmra.mrb[0].mxu0 %v524
    %v526 = vpop.f32.mrb[0].mxu0
    %v527 = vadd.f32 %v424, %v526
    %v528 = vpop.f32.mrb[0].mxu0
    %529 = vmatprep.mubr.f32.mxu0 0.0
    %v530 = vand.u32 %v39, 4294901760
    %531 = vmatmul.mubr.f32.gmra.mrb[0].mxu0 %v530
    %v532 = vpop.f32.mrb[0].mxu0
    %v533 = vadd.f32 %v432, %v532
    %v534 = vpop.f32.mrb[0].mxu0
    %535 = vdwg.mxu0
    %536 = vmatprep.subr.mxu0 0.0
    %v537 = vand.u32 %v26, 4294901760
    %538 = vmatpush1.msra.mxu0 %v537
    %539 = vmatprep.subr.mxu0 0.0
    %v540 = vand.u32 %v27, 4294901760
    %541 = vmatpush1.msra.mxu0 %v540
    %542 = vmatprep.subr.mxu0 0.0
    %v543 = vand.u32 %v28, 4294901760
    %544 = vmatpush1.msra.mxu0 %v543
    %545 = vmatprep.subr.mxu0 0.0
    %v546 = vand.u32 %v29, 4294901760
    %547 = vmatpush1.msra.mxu0 %v546
    %548 = vmatprep.subr.mxu0 0.0
    %v549 = vand.u32 %v30, 4294901760
    %550 = vmatpush1.msra.mxu0 %v549
    %551 = vmatprep.subr.mxu0 0.0
    %v552 = vand.u32 %v31, 4294901760
    %553 = vmatpush1.msra.mxu0 %v552
    %554 = vmatprep.subr.mxu0 0.0
    %v555 = vand.u32 %v32, 4294901760
    %556 = vmatpush1.msra.mxu0 %v555
    %557 = vmatprep.subr.mxu0 0.0
    %v558 = vand.u32 %v33, 4294901760
    %559 = vmatpush1.msra.mxu0 %v558
    %560 = vmatprep.subr.mxu0 0.0
    %561 = vmatpush1.msra.mxu0 0.0
    %562 = vmatprep.subr.mxu0 0.0
    %563 = vmatpush1.msra.mxu0 0.0
    %564 = vmatprep.subr.mxu0 0.0
    %565 = vmatpush1.msra.mxu0 0.0
    %566 = vmatprep.subr.mxu0 0.0
    %567 = vmatpush1.msra.mxu0 0.0
    %568 = vmatprep.subr.mxu0 0.0
    %569 = vmatpush1.msra.mxu0 0.0
    %570 = vmatprep.subr.mxu0 0.0
    %571 = vmatpush1.msra.mxu0 0.0
    %572 = vmatprep.subr.mxu0 0.0
    %573 = vmatpush1.msra.mxu0 0.0
    %574 = vmatprep.subr.mxu0 0.0
    %575 = vmatpush1.msra.mxu0 0.0
    %576 = vmatprep.subr.mxu0 0.0
    %577 = vmatpush1.msra.mxu0 0.0
    %578 = vmatprep.subr.mxu0 0.0
    %579 = vmatpush1.msra.mxu0 0.0
    %580 = vmatprep.subr.mxu0 0.0
    %581 = vmatpush1.msra.mxu0 0.0
    %582 = vmatprep.subr.mxu0 0.0
    %583 = vmatpush1.msra.mxu0 0.0
    %584 = vmatprep.subr.mxu0 0.0
    %585 = vmatpush1.msra.mxu0 0.0
    %586 = vmatprep.subr.mxu0 0.0
    %587 = vmatpush1.msra.mxu0 0.0
    %588 = vmatprep.subr.mxu0 0.0
    %589 = vmatpush1.msra.mxu0 0.0
    %590 = vmatprep.subr.mxu0 0.0
    %591 = vmatpush1.msra.mxu0 0.0
    %592 = vmatprep.subr.mxu0 0.0
    %593 = vmatpush1.msra.mxu0 0.0
    %594 = vmatprep.subr.mxu0 0.0
    %595 = vmatpush1.msra.mxu0 0.0
    %596 = vmatprep.subr.mxu0 0.0
    %597 = vmatpush1.msra.mxu0 0.0
    %598 = vmatprep.subr.mxu0 0.0
    %599 = vmatpush1.msra.mxu0 0.0
    %600 = vmatprep.subr.mxu0 0.0
    %601 = vmatpush1.msra.mxu0 0.0
    %602 = vmatprep.subr.mxu0 0.0
    %603 = vmatpush1.msra.mxu0 0.0
    %604 = vmatprep.subr.mxu0 0.0
    %605 = vmatpush1.msra.mxu0 0.0
    %606 = vmatprep.subr.mxu0 0.0
    %607 = vmatpush1.msra.mxu0 0.0
    %608 = vmatprep.mubr.f32.mxu0 0.0
    %v609 = vand.u32 %v36, 4294901760
    %610 = vmatmul.mubr.f32.gmra.mrb[0].mxu0 %v609
    %v611 = vpop.f32.mrb[0].mxu0
    %v612 = vadd.f32 %v527, %v611
    %v613 = vpop.f32.mrb[0].mxu0
    %614 = vmatprep.mubr.f32.mxu0 0.0
    %v615 = vand.u32 %v39, 4294901760
    %616 = vmatmul.mubr.f32.gmra.mrb[0].mxu0 %v615
    %v617 = vpop.f32.mrb[0].mxu0
    %v618 = vadd.f32 %v533, %v617
    %v619 = vpop.f32.mrb[0].mxu0
    %620 = vdwg.mxu0
    %v621 = vmul.f32 %v612, 5.656854
    %v622 = vmul.f32 %v618, 5.656854
    %vm623 = vcmask 261120
    %624 = vst.msk [vmem:[#allocation2] sm:$0xff] %vm623, %v621
    %625 = vst.msk [vmem:[#allocation2 + $0x8] sm:$0xff] %vm623, %v622
    // Predicated region
    $region10: #{tpu_custom_call.1} parent=1 // pred_check
      _
    $region11: #{tpu_custom_call.1} parent=1 // pred_check_branch
      %627 = sbr.rel (0) target = $region13
    $region12: #{tpu_custom_call.1} parent=1 // pred_region
      %s629 = ssub.s32 256, 256
      %630 = vsyncadd [#allocation3], %s629
      %s631 = sshll.u32 [#allocation2], 4
      %s632 = int_to_ptr.vmem [resolvable:$true] %s631
      %637 = dma.vmem_to_hbm [thread:$0]  %s632, 256, %s2, [#allocation3], 128, 128, 8
    $region13: #{tpu_custom_call.1} parent=1 // pred_fallthru
      _
    // Predicated region
    $region14: #{tpu_custom_call.1} parent=1 // pred_check
      _
    $region15: #{tpu_custom_call.1} parent=1 // pred_check_branch
      %639 = sbr.rel (0) target = $region17
    $region16: #{tpu_custom_call.1} parent=1 // pred_region
      %640 = dma.done [#allocation3], 256
    $region17: #{tpu_custom_call.1} parent=1 // pred_fallthru
      _
    %641 = vsyncpa [#allocation3], 1

</llo_original>
